<compile_context>
chip_gen: v5e
topology: v5e:2x2
jax: 0.10.0
libtpu: 0.0.40
codegen_flags: <defaults>
</compile_context>

<pallas_src>
import functools

import jax
import jax.numpy as jnp
from jax.experimental import pallas as pl
from jax.experimental.pallas import tpu as pltpu


def _box_loss_kernel(box_ref, w_ref, out_ref):
    """Per-tile GIoU loss, weighted by (score * mask), accumulated into (8,128)."""
    j = pl.program_id(0)

    @pl.when(j == 0)
    def _():
        out_ref[...] = jnp.zeros_like(out_ref)

    eps = jnp.float32(1e-9)

    def coord(k):
        # (T_sub, 128) dense sublane x lane operand; cast in-kernel so bf16
        # inputs stay bf16 over HBM.
        return box_ref[k].astype(jnp.float32)

    px1, py1, px2, py2 = coord(0), coord(1), coord(2), coord(3)
    tx1, ty1, tx2, ty2 = coord(4), coord(5), coord(6), coord(7)
    w = w_ref[...]                                   # (T_sub, 128) f32

    # intersection
    ix1 = jnp.maximum(px1, tx1)
    iy1 = jnp.maximum(py1, ty1)
    ix2 = jnp.minimum(px2, tx2)
    iy2 = jnp.minimum(py2, ty2)
    inter = jnp.maximum(ix2 - ix1, 0.0) * jnp.maximum(iy2 - iy1, 0.0)

    area_p = (px2 - px1) * (py2 - py1)
    area_t = (tx2 - tx1) * (ty2 - ty1)
    union = area_p + area_t - inter + eps

    # smallest enclosing box (GIoU term)
    cx1 = jnp.minimum(px1, tx1)
    cy1 = jnp.minimum(py1, ty1)
    cx2 = jnp.maximum(px2, tx2)
    cy2 = jnp.maximum(py2, ty2)
    c_area = (cx2 - cx1) * (cy2 - cy1) + eps

    # EUP reciprocals (free slot) + one Newton step to keep ~f32 accuracy.
    inv_u = pl.reciprocal(union, approx=True)
    inv_u = inv_u * (2.0 - union * inv_u)
    inv_c = pl.reciprocal(c_area, approx=True)
    inv_c = inv_c * (2.0 - c_area * inv_c)

    # giou = iou - (c_area - union)/c_area ; loss = 1 - giou
    #      = 2 - inter/union - union/c_area
    loss = 2.0 - inter * inv_u - union * inv_c       # (T_sub, 128)

    # per-(sublane,lane) partial accumulation; padded anchors carry w == 0.
    wl = loss * w
    out_ref[...] += wl.reshape(-1, 8, 128).sum(axis=0)   # VPU tree-add of vregs


@functools.partial(jax.jit, static_argnames=("tile_sub",))
def box_loss(pred_boxes, target_boxes, target_scores, mask, tile_sub=512):
    """GIoU BoxLoss forward.

    pred_boxes:    (B, A, 4) xyxy
    target_boxes:  (B, A, 4) xyxy
    target_scores: (B, A, C)
    mask:          (B, A)    bool (or {0,1})
    returns scalar float32 loss
    """
    B, A, _ = pred_boxes.shape
    N = B * A

    # Sublane tiling: anchors -> (sublane-groups, 128 lanes). Tile the sublane
    # axis in multiples of 8; cap for small inputs.
    nsub_data = pl.cdiv(N, 128)
    t_sub = min(int(tile_sub), pl.cdiv(nsub_data, 8) * 8)
    t_sub = max(8, (t_sub // 8) * 8)
    nsub = pl.cdiv(nsub_data, t_sub) * t_sub
    n_pad = nsub * 128
    num_tiles = nsub // t_sub

    # --- pack boxes: (N,4)+(N,4) -> (8, nsub, 128), rows = coordinate planes ---
    # (single pass concat + tiled transpose; TODO(synk): ideally the upstream
    # producer emits this layout directly so the wrapper does no extra HBM pass)
    boxes8 = jnp.concatenate(
        [pred_boxes.reshape(N, 4), target_boxes.reshape(N, 4)], axis=-1)  # (N, 8)
    boxes8 = jnp.pad(boxes8, ((0, n_pad - N), (0, 0)))
    boxes_packed = jnp.transpose(
        jnp.swapaxes(boxes8.reshape(nsub, 128, 8), 1, 2), (1, 0, 2))       # (8,nsub,128)

    # --- weights: score-sum over classes * mask, pre-reduced in the wrapper ---
    mask_f = mask.reshape(N).astype(jnp.float32)
    scores_anchor = target_scores.astype(jnp.float32).sum(-1).reshape(N)
    w_flat = scores_anchor * mask_f
    w_packed = jnp.pad(w_flat, (0, n_pad - N)).reshape(nsub, 128)          # (nsub,128) f32

    # Scalar reductions only needed for normalization (cheap XLA ops).
    num_pos = mask_f.sum()
    s_total = scores_anchor.sum()

    partials = pl.pallas_call(
        _box_loss_kernel,
        out_shape=jax.ShapeDtypeStruct((8, 128), jnp.float32),
        grid=(num_tiles,),
        in_specs=[
            pl.BlockSpec((8, t_sub, 128), lambda j: (0, j, 0)),   # packed boxes
            pl.BlockSpec((t_sub, 128), lambda j: (j, 0)),         # weights
        ],
        # lane-dense accumulator block, resident across the reduction axis
        out_specs=pl.BlockSpec((8, 128), lambda j: (0, 0)),
        compiler_params=pltpu.CompilerParams(
            dimension_semantics=("arbitrary",)),
    )(boxes_packed, w_packed)

    wsum = partials.sum()   # sum over positives of giou_loss * score_weight

    # if num_pos > 0: (sum / s_total) if s_total > 1 else sum; else 0.0
    loss = jnp.where(
        num_pos > 0,
        jnp.where(s_total > 1, wsum / jnp.maximum(s_total, 1.0), wsum),
        jnp.float32(0.0))
    return loss.astype(jnp.float32)


def _reference_box_loss(pred_boxes, target_boxes, target_scores, mask):
    """Pure-JAX reference mirroring the PyTorch module (giou, eps=1e-9)."""
    eps = 1e-9
    p = pred_boxes.reshape(-1, 4).astype(jnp.float32)
    t = target_boxes.reshape(-1, 4).astype(jnp.float32)
    m = mask.reshape(-1).astype(jnp.float32)
    w = target_scores.sum(-1).reshape(-1).astype(jnp.float32)

    ix1 = jnp.maximum(p[:, 0], t[:, 0]); iy1 = jnp.maximum(p[:, 1], t[:, 1])
    ix2 = jnp.minimum(p[:, 2], t[:, 2]); iy2 = jnp.minimum(p[:, 3], t[:, 3])
    inter = jnp.maximum(ix2 - ix1, 0) * jnp.maximum(iy2 - iy1, 0)
    area_p = (p[:, 2] - p[:, 0]) * (p[:, 3] - p[:, 1])
    area_t = (t[:, 2] - t[:, 0]) * (t[:, 3] - t[:, 1])
    union = area_p + area_t - inter + eps
    iou = inter / union
    cx1 = jnp.minimum(p[:, 0], t[:, 0]); cy1 = jnp.minimum(p[:, 1], t[:, 1])
    cx2 = jnp.maximum(p[:, 2], t[:, 2]); cy2 = jnp.maximum(p[:, 3], t[:, 3])
    c_area = (cx2 - cx1) * (cy2 - cy1) + eps
    loss = 1.0 - (iou - (c_area - union) / c_area)

    num_pos = m.sum()
    s_total = w.sum()
    total = (loss * w * m).sum()
    out = jnp.where(num_pos > 0,
                    jnp.where(s_total > 1, total / s_total, total),
                    0.0)
    return out.astype(jnp.float32)


if __name__ == "__main__":
    key = jax.random.PRNGKey(0)
    B, A, C = 2, 64, 4  # N = B*A = 128

    k1, k2, k3, k4, k5, k6 = jax.random.split(key, 6)

    def make_boxes(kxy, kwh):
        xy = jax.random.uniform(kxy, (B, A, 2), minval=0.0, maxval=10.0)
        wh = jax.random.uniform(kwh, (B, A, 2), minval=0.5, maxval=5.0)
        return jnp.concatenate([xy, xy + wh], axis=-1)  # xyxy, x2>x1, y2>y1

    pred_boxes = make_boxes(k1, k2)
    target_boxes = make_boxes(k3, k4)
    target_scores = jax.random.uniform(k5, (B, A, C), minval=0.0, maxval=1.0)
    mask = jax.random.bernoulli(k6, p=0.3, shape=(B, A))

    loss = box_loss(pred_boxes, target_boxes, target_scores, mask)
    jax.block_until_ready(loss)

    ref = _reference_box_loss(pred_boxes, target_boxes, target_scores, mask)
    assert jnp.allclose(loss, ref, rtol=1e-5, atol=1e-5), (loss, ref)

    print("KERNEL_OK")
</pallas_src>

<mosaic_0001>
module attributes {stable_mosaic.version = 11 : i64} {
  func.func @_box_loss_kernel(%arg0: i32, %arg1: memref<8x8x128xf32, #tpu.memory_space<vmem>>, %arg2: memref<8x128xf32, #tpu.memory_space<vmem>>, %arg3: memref<8x128xf32, #tpu.memory_space<vmem>>) attributes {dimension_semantics = [#tpu.dimension_semantics<arbitrary>], iteration_bounds = array<i64: 1>, scalar_prefetch = 0 : i64, scratch_operands = 0 : i64, tpu.core_type = #tpu.core_type<tc>, window_params = [{transform_indices = @transform_0, window_bounds = array<i64: 8, 8, 128>}, {transform_indices = @transform_1, window_bounds = array<i64: 8, 128>}, {pipeline_mode = #tpu.pipeline_mode<synchronous>, transform_indices = @transform_2, window_bounds = array<i64: 8, 128>}]} {
    %c0_i32 = arith.constant 0 : i32
    %0 = arith.cmpi eq, %arg0, %c0_i32 : i32
    %1 = arith.extui %0 : i1 to i32
    %c0_i32_0 = arith.constant 0 : i32
    %2 = arith.cmpi ne, %1, %c0_i32_0 : i32
    scf.if %2 {
      %cst_30 = arith.constant 0.000000e+00 : f32
      %71 = vector.broadcast %cst_30 : f32 to vector<8x128xf32>
      %c0_31 = arith.constant 0 : index
      %c0_32 = arith.constant 0 : index
      %72 = vector.load %arg3[%c0_31, %c0_32] : memref<8x128xf32, #tpu.memory_space<vmem>>, vector<8x128xf32>
      tpu.vector_store %arg3[%c0_31, %c0_32], %71 {strides = array<i32>} : memref<8x128xf32, #tpu.memory_space<vmem>>, vector<8x128xf32>,
    } else {
    }
    %c0 = arith.constant 0 : index
    %c0_1 = arith.constant 0 : index
    %c0_2 = arith.constant 0 : index
    %3 = vector.load %arg1[%c0, %c0_1, %c0_2] : memref<8x8x128xf32, #tpu.memory_space<vmem>>, vector<1x8x128xf32>
    %4 = vector.shape_cast %3 : vector<1x8x128xf32> to vector<8x128xf32>
    %c1 = arith.constant 1 : index
    %c0_3 = arith.constant 0 : index
    %c0_4 = arith.constant 0 : index
    %5 = vector.load %arg1[%c1, %c0_3, %c0_4] : memref<8x8x128xf32, #tpu.memory_space<vmem>>, vector<1x8x128xf32>
    %6 = vector.shape_cast %5 : vector<1x8x128xf32> to vector<8x128xf32>
    %c2 = arith.constant 2 : index
    %c0_5 = arith.constant 0 : index
    %c0_6 = arith.constant 0 : index
    %7 = vector.load %arg1[%c2, %c0_5, %c0_6] : memref<8x8x128xf32, #tpu.memory_space<vmem>>, vector<1x8x128xf32>
    %8 = vector.shape_cast %7 : vector<1x8x128xf32> to vector<8x128xf32>
    %c3 = arith.constant 3 : index
    %c0_7 = arith.constant 0 : index
    %c0_8 = arith.constant 0 : index
    %9 = vector.load %arg1[%c3, %c0_7, %c0_8] : memref<8x8x128xf32, #tpu.memory_space<vmem>>, vector<1x8x128xf32>
    %10 = vector.shape_cast %9 : vector<1x8x128xf32> to vector<8x128xf32>
    %c4 = arith.constant 4 : index
    %c0_9 = arith.constant 0 : index
    %c0_10 = arith.constant 0 : index
    %11 = vector.load %arg1[%c4, %c0_9, %c0_10] : memref<8x8x128xf32, #tpu.memory_space<vmem>>, vector<1x8x128xf32>
    %12 = vector.shape_cast %11 : vector<1x8x128xf32> to vector<8x128xf32>
    %c5 = arith.constant 5 : index
    %c0_11 = arith.constant 0 : index
    %c0_12 = arith.constant 0 : index
    %13 = vector.load %arg1[%c5, %c0_11, %c0_12] : memref<8x8x128xf32, #tpu.memory_space<vmem>>, vector<1x8x128xf32>
    %14 = vector.shape_cast %13 : vector<1x8x128xf32> to vector<8x128xf32>
    %c6 = arith.constant 6 : index
    %c0_13 = arith.constant 0 : index
    %c0_14 = arith.constant 0 : index
    %15 = vector.load %arg1[%c6, %c0_13, %c0_14] : memref<8x8x128xf32, #tpu.memory_space<vmem>>, vector<1x8x128xf32>
    %16 = vector.shape_cast %15 : vector<1x8x128xf32> to vector<8x128xf32>
    %c7 = arith.constant 7 : index
    %c0_15 = arith.constant 0 : index
    %c0_16 = arith.constant 0 : index
    %17 = vector.load %arg1[%c7, %c0_15, %c0_16] : memref<8x8x128xf32, #tpu.memory_space<vmem>>, vector<1x8x128xf32>
    %18 = vector.shape_cast %17 : vector<1x8x128xf32> to vector<8x128xf32>
    %c0_17 = arith.constant 0 : index
    %c0_18 = arith.constant 0 : index
    %19 = vector.load %arg2[%c0_17, %c0_18] : memref<8x128xf32, #tpu.memory_space<vmem>>, vector<8x128xf32>
    %20 = arith.maximumf %4, %12 : vector<8x128xf32>
    %21 = arith.maximumf %6, %14 : vector<8x128xf32>
    %22 = arith.minimumf %8, %16 : vector<8x128xf32>
    %23 = arith.minimumf %10, %18 : vector<8x128xf32>
    %24 = arith.subf %22, %20 : vector<8x128xf32>
    %cst = arith.constant 0.000000e+00 : f32
    %25 = vector.broadcast %cst : f32 to vector<8x128xf32>
    %26 = arith.maximumf %24, %25 : vector<8x128xf32>
    %27 = arith.subf %23, %21 : vector<8x128xf32>
    %cst_19 = arith.constant 0.000000e+00 : f32
    %28 = vector.broadcast %cst_19 : f32 to vector<8x128xf32>
    %29 = arith.maximumf %27, %28 : vector<8x128xf32>
    %30 = arith.mulf %26, %29 : vector<8x128xf32>
    %31 = arith.subf %8, %4 : vector<8x128xf32>
    %32 = arith.subf %10, %6 : vector<8x128xf32>
    %33 = arith.mulf %31, %32 : vector<8x128xf32>
    %34 = arith.subf %16, %12 : vector<8x128xf32>
    %35 = arith.subf %18, %14 : vector<8x128xf32>
    %36 = arith.mulf %34, %35 : vector<8x128xf32>
    %37 = arith.addf %33, %36 : vector<8x128xf32>
    %38 = arith.subf %37, %30 : vector<8x128xf32>
    %cst_20 = arith.constant 9.99999971E-10 : f32
    %39 = vector.broadcast %cst_20 : f32 to vector<8x128xf32>
    %40 = arith.addf %38, %39 : vector<8x128xf32>
    %41 = arith.minimumf %4, %12 : vector<8x128xf32>
    %42 = arith.minimumf %6, %14 : vector<8x128xf32>
    %43 = arith.maximumf %8, %16 : vector<8x128xf32>
    %44 = arith.maximumf %10, %18 : vector<8x128xf32>
    %45 = arith.subf %43, %41 : vector<8x128xf32>
    %46 = arith.subf %44, %42 : vector<8x128xf32>
    %47 = arith.mulf %45, %46 : vector<8x128xf32>
    %cst_21 = arith.constant 9.99999971E-10 : f32
    %48 = vector.broadcast %cst_21 : f32 to vector<8x128xf32>
    %49 = arith.addf %47, %48 : vector<8x128xf32>
    %50 = tpu.reciprocal %40 {approx = true} : vector<8x128xf32> -> vector<8x128xf32>
    %51 = arith.mulf %40, %50 : vector<8x128xf32>
    %cst_22 = arith.constant 2.000000e+00 : f32
    %52 = vector.broadcast %cst_22 : f32 to vector<8x128xf32>
    %53 = arith.subf %52, %51 : vector<8x128xf32>
    %54 = arith.mulf %50, %53 : vector<8x128xf32>
    %55 = tpu.reciprocal %49 {approx = true} : vector<8x128xf32> -> vector<8x128xf32>
    %56 = arith.mulf %49, %55 : vector<8x128xf32>
    %cst_23 = arith.constant 2.000000e+00 : f32
    %57 = vector.broadcast %cst_23 : f32 to vector<8x128xf32>
    %58 = arith.subf %57, %56 : vector<8x128xf32>
    %59 = arith.mulf %55, %58 : vector<8x128xf32>
    %60 = arith.mulf %30, %54 : vector<8x128xf32>
    %cst_24 = arith.constant 2.000000e+00 : f32
    %61 = vector.broadcast %cst_24 : f32 to vector<8x128xf32>
    %62 = arith.subf %61, %60 : vector<8x128xf32>
    %63 = arith.mulf %40, %59 : vector<8x128xf32>
    %64 = arith.subf %62, %63 : vector<8x128xf32>
    %65 = arith.mulf %64, %19 : vector<8x128xf32>
    %c0_25 = arith.constant 0 : index
    %c0_26 = arith.constant 0 : index
    %66 = vector.load %arg3[%c0_25, %c0_26] : memref<8x128xf32, #tpu.memory_space<vmem>>, vector<8x128xf32>
    %67 = vector.shape_cast %65 : vector<8x128xf32> to vector<1x8x128xf32>
    %cst_27 = arith.constant dense<0.000000e+00> : vector<8x128xf32>
    %68 = vector.multi_reduction <add>, %67, %cst_27 [0] : vector<1x8x128xf32> to vector<8x128xf32>
    %69 = arith.addf %66, %68 : vector<8x128xf32>
    %c0_28 = arith.constant 0 : index
    %c0_29 = arith.constant 0 : index
    %70 = vector.load %arg3[%c0_28, %c0_29] : memref<8x128xf32, #tpu.memory_space<vmem>>, vector<8x128xf32>
    tpu.vector_store %arg3[%c0_28, %c0_29], %69 {strides = array<i32>} : memref<8x128xf32, #tpu.memory_space<vmem>>, vector<8x128xf32>,
    return
  }
  func.func @transform_0(%arg0: i32) -> (i32, i32, i32) {
    %c0_i32 = arith.constant 0 : i32
    %c0_i32_0 = arith.constant 0 : i32
    %c0_i32_1 = arith.constant 0 : i32
    return %c0_i32, %arg0, %c0_i32_0 : i32, i32, i32
  }
  func.func @transform_1(%arg0: i32) -> (i32, i32) {
    %c0_i32 = arith.constant 0 : i32
    %c0_i32_0 = arith.constant 0 : i32
    return %arg0, %c0_i32 : i32, i32
  }
  func.func @transform_2(%arg0: i32) -> (i32, i32) {
    %c0_i32 = arith.constant 0 : i32
    %c0_i32_0 = arith.constant 0 : i32
    %c0_i32_1 = arith.constant 0 : i32
    return %c0_i32, %c0_i32_0 : i32, i32
  }
}

</mosaic_0001>

<llo_original>
// kernel: box_loss.1
$region0: #{box_loss.1}
  #allocation0 [shape = 'u32[]', space=smem, size = 0x4, offset = 0x4, fixed_abs, tag = 'smem constant byte address 0x4 - core index']
  #allocation1 [shape = 'u32[72,128]{1,0:T(1,128)}', space=vmem, size = 0x9000, scoped, tag = 'internal scratch']
  %s0 = inlined_call_operand.vmem [shape: f32[8,8,128], index: 0, kind: input, shape index: {}]
  %s1 = inlined_call_operand.vmem [shape: f32[8,128], index: 1, kind: input, shape index: {}]
  %s2 = inlined_call_operand.vmem [shape: f32[8,128], index: 2, kind: output, shape index: {}]
  %s3 = sld [smem:[#allocation0]]
  $region22: #{box_loss.1} parent=0
    _
  %s5 = ssub.s32 1, %s3
  %s6 = scalar_select 0, %s5, %s3
  // Predicated region
  $region2: #{box_loss.1} parent=0 // pred_check
    _
  $region3: #{box_loss.1} parent=0 // pred_check_branch
    %8 = sbr.rel (0) target = $region5
  $region4: #{box_loss.1} parent=0 // pred_region
    _
  $region5: #{box_loss.1} parent=0 // pred_fallthru
    _
  // Predicated region
  $region6: #{box_loss.1} parent=0 // pred_check
    _
  $region7: #{box_loss.1} parent=0 // pred_check_branch
    %10 = sbr.rel (0) target = $region9
  $region8: #{box_loss.1} parent=0 // pred_region
    _
  $region9: #{box_loss.1} parent=0 // pred_fallthru
    _
  %p11 = scmp.eq.s32.totalorder 0, 0
  // Predicated region
  $region10: #{box_loss.1} parent=0 // pred_check
    %p12 = pneg %p11
  $region11: #{box_loss.1} parent=0 // pred_check_branch
    %14 = sbr.rel (%p12) target = $region13
  $region12: #{box_loss.1} parent=0 // pred_region
    %15 = vst [vmem:[%s2] sm:$0xff] 0.0
  $region13: #{box_loss.1} parent=0 // pred_fallthru
    _
  %v16 = vld [vmem:[%s0] sm:$0xff]
  %s17 = scalar_lea.vmem %s0, 8
  %v18 = vld [vmem:[%s17] sm:$0xff]
  %s19 = scalar_lea.vmem %s0, 16
  %v20 = vld [vmem:[%s19] sm:$0xff]
  %s21 = scalar_lea.vmem %s0, 24
  %v22 = vld [vmem:[%s21] sm:$0xff]
  %s23 = scalar_lea.vmem %s0, 32
  %v24 = vld [vmem:[%s23] sm:$0xff]
  %s25 = scalar_lea.vmem %s0, 40
  %v26 = vld [vmem:[%s25] sm:$0xff]
  %s27 = scalar_lea.vmem %s0, 48
  %v28 = vld [vmem:[%s27] sm:$0xff]
  %s29 = scalar_lea.vmem %s0, 56
  %v30 = vld [vmem:[%s29] sm:$0xff]
  %v31 = vld [vmem:[%s1] sm:$0xff]
  %v32 = vmax.f32 %v16, %v24
  %v33 = vmax.f32 %v18, %v26
  %v34 = vmin.f32 %v20, %v28
  %v35 = vmin.f32 %v22, %v30
  %v36 = vsub.f32 %v34, %v32
  %v37 = vmax.f32 %v36, 0.0
  %v38 = vsub.f32 %v35, %v33
  %v39 = vmax.f32 %v38, 0.0
  %v40 = vmul.f32 %v37, %v39
  %v41 = vsub.f32 %v20, %v16
  %v42 = vsub.f32 %v22, %v18
  %v43 = vmul.f32 %v41, %v42
  %v44 = vsub.f32 %v28, %v24
  %v45 = vsub.f32 %v30, %v26
  %v46 = vmul.f32 %v44, %v45
  %v47 = vadd.f32 %v43, %v46
  %v48 = vsub.f32 %v47, %v40
  %v49 = vadd.f32 %v48, 1e-09
  %v50 = vmin.f32 %v16, %v24
  %v51 = vmin.f32 %v18, %v26
  %v52 = vmax.f32 %v20, %v28
  %v53 = vmax.f32 %v22, %v30
  %v54 = vsub.f32 %v52, %v50
  %v55 = vsub.f32 %v53, %v51
  %v56 = vmul.f32 %v54, %v55
  %v57 = vadd.f32 %v56, 1e-09
  %v58 = vrcp.pop %v49
  %v59 = vmul.f32 %v49, %v58
  %v60 = vsub.f32 2.0, %v59
  %v61 = vmul.f32 %v58, %v60
  %v62 = vrcp.pop %v57
  %v63 = vmul.f32 %v57, %v62
  %v64 = vsub.f32 2.0, %v63
  %v65 = vmul.f32 %v62, %v64
  %v66 = vmul.f32 %v40, %v61
  %v67 = vsub.f32 2.0, %v66
  %v68 = vmul.f32 %v49, %v65
  %v69 = vsub.f32 %v67, %v68
  %v70 = vmul.f32 %v69, %v31
  %v71 = vld [vmem:[%s2] sm:$0xff]
  %v72 = vadd.f32 %v70, 0.0
  %v73 = vadd.f32 %v71, %v72
  %74 = vst [vmem:[%s2] sm:$0xff] %v73
  // Predicated region
  $region14: #{box_loss.1} parent=0 // pred_check
    _
  $region15: #{box_loss.1} parent=0 // pred_check_branch
    %76 = sbr.rel (0) target = $region17
  $region16: #{box_loss.1} parent=0 // pred_region
    _
  $region17: #{box_loss.1} parent=0 // pred_fallthru
    _
  // Predicated region
  $region18: #{box_loss.1} parent=0 // pred_check
    _
  $region19: #{box_loss.1} parent=0 // pred_check_branch
    %78 = sbr.rel (0) target = $region21
  $region20: #{box_loss.1} parent=0 // pred_region
    _
  $region21: #{box_loss.1} parent=0 // pred_fallthru
    _

</llo_original>
